<compile_context>
chip_gen: v5e
topology: v5e:2x2
jax: 0.10.0
libtpu: 0.0.40
codegen_flags: <defaults>
</compile_context>

<pallas_src>
import functools
import math

import jax
import jax.numpy as jnp
from jax.experimental import pallas as pl
from jax.experimental.pallas import tpu as pltpu


# ---------------------------------------------------------------------------
# Tiling helpers
# ---------------------------------------------------------------------------
def _pick_tile(dim, candidates):
    for c in candidates:
        if c <= dim and dim % c == 0:
            return c
    return dim


def _pick_row_tile(rows, cols, max_bytes=1 << 20):
    for c in (1024, 512, 256, 128, 64, 32, 16, 8):
        if c <= rows and rows % c == 0 and c * cols * 4 <= max_bytes:
            return c
    return rows


# ---------------------------------------------------------------------------
# Pallas kernels
# ---------------------------------------------------------------------------
def _matmul_acc_kernel(x_ref, w_ref, o_ref, acc_ref):
    """grid = (M_tiles, K_tiles); accumulates over the K axis."""
    k = pl.program_id(1)

    @pl.when(k == 0)
    def _():
        acc_ref[...] = jnp.zeros_like(acc_ref)

    acc_ref[...] += jnp.dot(x_ref[...], w_ref[...],
                            preferred_element_type=jnp.float32)

    @pl.when(k == pl.num_programs(1) - 1)
    def _():
        o_ref[...] = acc_ref[...]


def _matmul_simple_kernel(x_ref, w_ref, o_ref):
    """Single K step: no accumulator scratch, no predicated branches."""
    o_ref[...] = jnp.dot(x_ref[...], w_ref[...],
                         preferred_element_type=jnp.float32)


def _bn_stats_kernel(x_ref, sum_ref, sq_ref):
    """Accumulate per-channel sum / sum-of-squares over row tiles."""
    @pl.when(pl.program_id(0) == 0)
    def _():
        sum_ref[...] = jnp.zeros_like(sum_ref)
        sq_ref[...] = jnp.zeros_like(sq_ref)

    x = x_ref[...]
    sum_ref[...] += jnp.sum(x, axis=0, keepdims=True)
    sq_ref[...] += jnp.sum(x * x, axis=0, keepdims=True)


def _scale_shift_kernel(x_ref, s_ref, b_ref, o_ref, *, relu):
    y = x_ref[...] * s_ref[...] + b_ref[...]
    if relu:
        y = jnp.maximum(y, 0.0)
    o_ref[...] = y


def _dual_bn_add_relu_kernel(a_ref, sa_ref, ba_ref, b_ref, sb_ref, bb_ref, o_ref):
    """Fused: BN(a) + BN(b) (or identity when sb=1,bb=0) -> add -> ReLU."""
    ya = a_ref[...] * sa_ref[...] + ba_ref[...]
    yb = b_ref[...] * sb_ref[...] + bb_ref[...]
    o_ref[...] = jnp.maximum(ya + yb, 0.0)


# ---------------------------------------------------------------------------
# pallas_call wrappers
# ---------------------------------------------------------------------------
def pallas_matmul(x, w):
    """(M, K) @ (K, N) -> (M, N) f32.  bf16 MXU inputs, f32 accumulation."""
    M, K = x.shape
    Cn = w.shape[1]
    x = x.astype(jnp.bfloat16)
    w = w.astype(jnp.bfloat16)
    tm = _pick_tile(M, [256, 128, 64, 32, 16, 8])
    tk = _pick_tile(K, [512, 256, 128])
    nk = K // tk

    if nk == 1:
        return pl.pallas_call(
            _matmul_simple_kernel,
            out_shape=jax.ShapeDtypeStruct((M, Cn), jnp.float32),
            grid_spec=pltpu.PrefetchScalarGridSpec(
                num_scalar_prefetch=0,
                grid=(M // tm,),
                in_specs=[pl.BlockSpec((tm, K), lambda i: (i, 0)),
                          pl.BlockSpec((K, Cn), lambda i: (0, 0))],
                out_specs=pl.BlockSpec((tm, Cn), lambda i: (i, 0)),
            ),
            compiler_params=pltpu.CompilerParams(
                dimension_semantics=("parallel",)),
        )(x, w)

    return pl.pallas_call(
        _matmul_acc_kernel,
        out_shape=jax.ShapeDtypeStruct((M, Cn), jnp.float32),
        grid_spec=pltpu.PrefetchScalarGridSpec(
            num_scalar_prefetch=0,
            grid=(M // tm, nk),
            in_specs=[pl.BlockSpec((tm, tk), lambda i, k: (i, k)),
                      pl.BlockSpec((tk, Cn), lambda i, k: (k, 0))],
            out_specs=pl.BlockSpec((tm, Cn), lambda i, k: (i, 0)),
            scratch_shapes=[pltpu.VMEM((tm, Cn), jnp.float32)],
        ),
        compiler_params=pltpu.CompilerParams(
            dimension_semantics=("parallel", "arbitrary")),
    )(x, w)


def batch_stats(xf):
    """xf: (R, C) f32 -> per-channel mean and biased variance, shape (1, C)."""
    R, C = xf.shape
    tr = _pick_row_tile(R, C)
    s, sq = pl.pallas_call(
        _bn_stats_kernel,
        out_shape=(jax.ShapeDtypeStruct((1, C), jnp.float32),
                   jax.ShapeDtypeStruct((1, C), jnp.float32)),
        grid_spec=pltpu.PrefetchScalarGridSpec(
            num_scalar_prefetch=0,
            grid=(R // tr,),
            in_specs=[pl.BlockSpec((tr, C), lambda i: (i, 0))],
            out_specs=[pl.BlockSpec((1, C), lambda i: (0, 0)),
                       pl.BlockSpec((1, C), lambda i: (0, 0))],
        ),
        compiler_params=pltpu.CompilerParams(
            dimension_semantics=("arbitrary",)),
    )(xf)
    mean = s / R
    var = jnp.maximum(sq / R - mean * mean, 0.0)
    return mean, var


def bn_scale_shift(mean, var, gamma, beta, eps=1e-5):
    scale = gamma * jax.lax.rsqrt(var + eps)
    shift = beta - mean * scale
    return scale, shift


def bn_apply(xf, scale, shift, relu):
    R, C = xf.shape
    tr = _pick_row_tile(R, C)
    kern = functools.partial(_scale_shift_kernel, relu=relu)
    return pl.pallas_call(
        kern,
        out_shape=jax.ShapeDtypeStruct((R, C), jnp.float32),
        grid_spec=pltpu.PrefetchScalarGridSpec(
            num_scalar_prefetch=0,
            grid=(R // tr,),
            in_specs=[pl.BlockSpec((tr, C), lambda i: (i, 0)),
                      pl.BlockSpec((1, C), lambda i: (0, 0)),
                      pl.BlockSpec((1, C), lambda i: (0, 0))],
            out_specs=pl.BlockSpec((tr, C), lambda i: (i, 0)),
        ),
        compiler_params=pltpu.CompilerParams(
            dimension_semantics=("parallel",)),
    )(xf, scale, shift)


def dual_bn_add_relu(a, sa, ba, b, sb, bb):
    R, C = a.shape
    tr = _pick_row_tile(R, C)
    return pl.pallas_call(
        _dual_bn_add_relu_kernel,
        out_shape=jax.ShapeDtypeStruct((R, C), jnp.float32),
        grid_spec=pltpu.PrefetchScalarGridSpec(
            num_scalar_prefetch=0,
            grid=(R // tr,),
            in_specs=[pl.BlockSpec((tr, C), lambda i: (i, 0)),
                      pl.BlockSpec((1, C), lambda i: (0, 0)),
                      pl.BlockSpec((1, C), lambda i: (0, 0)),
                      pl.BlockSpec((tr, C), lambda i: (i, 0)),
                      pl.BlockSpec((1, C), lambda i: (0, 0)),
                      pl.BlockSpec((1, C), lambda i: (0, 0))],
            out_specs=pl.BlockSpec((tr, C), lambda i: (i, 0)),
        ),
        compiler_params=pltpu.CompilerParams(
            dimension_semantics=("parallel",)),
    )(a, sa, ba, b, sb, bb)


# ---------------------------------------------------------------------------
# ConvTranspose2d variants (NHWC activations; im2col / pixel-shuffle is glue,
# the matmul hot path runs inside the Pallas kernel)
# ---------------------------------------------------------------------------
def conv1x1(x, w_mat):
    N, H, W_, Cin = x.shape
    Cout = w_mat.shape[1]
    y = pallas_matmul(x.reshape(N * H * W_, Cin), w_mat)
    return y.reshape(N, H, W_, Cout)


def conv1x1_stride2_outpad1(x, w_mat):
    """ConvTranspose2d(k=1, s=2, p=0, output_padding=1): odd positions are 0."""
    N, H, W_, Cin = x.shape
    Cout = w_mat.shape[1]
    z = pallas_matmul(x.reshape(N * H * W_, Cin), w_mat).reshape(N, H, W_, Cout)
    z = z[:, :, None, :, None, :]
    z = jnp.pad(z, ((0, 0), (0, 0), (0, 1), (0, 0), (0, 1), (0, 0)))
    return z.reshape(N, 2 * H, 2 * W_, Cout)


def conv3x3_stride2(x, w_u):
    """ConvTranspose2d(k=3, s=2, p=1, out_pad=1) via sub-pixel decomposition."""
    N, H, W_, Cin = x.shape
    Cout = w_u.shape[1] // 4
    xp = jnp.pad(x.astype(jnp.bfloat16), ((0, 0), (0, 1), (0, 1), (0, 0)))
    cols = jnp.concatenate(
        [xp[:, th:th + H, tw:tw + W_, :] for th in (0, 1) for tw in (0, 1)],
        axis=-1).reshape(N * H * W_, 4 * Cin)
    y = pallas_matmul(cols, w_u)                       # (M, 4*Cout)
    y = y.reshape(N, H, W_, 2, 2, Cout)
    y = jnp.transpose(y, (0, 1, 3, 2, 4, 5))           # pixel shuffle
    return y.reshape(N, 2 * H, 2 * W_, Cout)


def conv3x3_stride1(x, w_mat):
    """ConvTranspose2d(k=3, s=1, p=1): 'same' conv, taps folded into K."""
    N, H, W_, Cin = x.shape
    Cout = w_mat.shape[1]
    xp = jnp.pad(x.astype(jnp.bfloat16), ((0, 0), (1, 1), (1, 1), (0, 0)))
    cols = jnp.concatenate(
        [xp[:, kh:kh + H, kw:kw + W_, :] for kh in range(3) for kw in range(3)],
        axis=-1).reshape(N * H * W_, 9 * Cin)
    y = pallas_matmul(cols, w_mat)
    return y.reshape(N, H, W_, Cout)


def conv2x2_stride2(x, w_u):
    """ConvTranspose2d(k=2, s=2, p=0): per-pixel matmul + pixel shuffle."""
    N, H, W_, Cin = x.shape
    Cout = w_u.shape[1] // 4
    y = pallas_matmul(x.reshape(N * H * W_, Cin), w_u)
    y = y.reshape(N, H, W_, 2, 2, Cout)
    y = jnp.transpose(y, (0, 1, 3, 2, 4, 5))
    return y.reshape(N, 2 * H, 2 * W_, Cout)


# ---------------------------------------------------------------------------
# Weight preparation (done once at init; stored in matmul layout, bf16)
# ---------------------------------------------------------------------------
def _w_1x1_mat(w):                       # (Cin,Cout,1,1) -> (Cin,Cout)
    return w[:, :, 0, 0]


def _w_3x3_s1_mat(w):                    # flipped, taps folded: (9*Cin, Cout)
    wf = jnp.transpose(w[:, :, ::-1, ::-1], (2, 3, 0, 1))
    return wf.reshape(9 * w.shape[0], w.shape[1])


def _w_3x3_s2_mat(w):
    """Sub-pixel unified weight (4*Cin, 4*Cout) for k=3,s=2,p=1,out_pad=1.

    y[2i+dh, 2j+dw] = sum_{th,tw in {0,1}} x[i+th, j+tw] * w[:, :, kh, kw]
    with kh = dh + 1 - 2*th, kw = dw + 1 - 2*tw (zero if out of [0,2])."""
    cin, cout = w.shape[0], w.shape[1]
    sel = {(0, 0): 1, (1, 0): 2, (1, 1): 0}          # (phase d, tap t) -> k index
    wu = jnp.zeros((2, 2, cin, 2, 2, cout), jnp.float32)
    for th in (0, 1):
        for tw in (0, 1):
            for dh in (0, 1):
                for dw in (0, 1):
                    kh, kw = sel.get((dh, th)), sel.get((dw, tw))
                    if kh is not None and kw is not None:
                        wu = wu.at[th, tw, :, dh, dw, :].set(w[:, :, kh, kw])
    return wu.reshape(4 * cin, 4 * cout)


def _w_2x2_s2_mat(w):                    # (Cin,Cout,2,2) -> (Cin, 4*Cout)
    cin, cout = w.shape[0], w.shape[1]
    return jnp.transpose(w, (0, 2, 3, 1)).reshape(cin, 4 * cout)


# ---------------------------------------------------------------------------
# Parameter init (deterministic; mirrors the PyTorch module's shapes)
# ---------------------------------------------------------------------------
def _uniform_convT(key, cin, cout, k):
    fan_in = cout * k * k                # PyTorch fan-in for ConvTranspose2d
    bound = 1.0 / math.sqrt(fan_in)
    return jax.random.uniform(key, (cin, cout, k, k), jnp.float32, -bound, bound)


def _bn_params(key, c):
    kg, kb = jax.random.split(key)
    gamma = 1.0 + 0.1 * jax.random.normal(kg, (1, c), jnp.float32)
    beta = 0.1 * jax.random.normal(kb, (1, c), jnp.float32)
    return gamma, beta


def init_block(key, in_ch, inter_ch, stride, has_ds):
    mid = inter_ch // 4
    ks = jax.random.split(key, 8)
    p = {"stride": stride, "has_ds": has_ds}
    w1 = _uniform_convT(ks[0], in_ch, mid, 1)
    w2 = _uniform_convT(ks[1], mid, mid, 3)
    w3 = _uniform_convT(ks[2], mid, mid, 1)
    p["w1"] = _w_1x1_mat(w1).astype(jnp.bfloat16)
    p["w2"] = (_w_3x3_s2_mat(w2) if stride == 2
               else _w_3x3_s1_mat(w2)).astype(jnp.bfloat16)
    p["w3"] = _w_1x1_mat(w3).astype(jnp.bfloat16)
    p["g1"], p["b1"] = _bn_params(ks[3], mid)
    p["g2"], p["b2"] = _bn_params(ks[4], mid)
    p["g3"], p["b3"] = _bn_params(ks[5], mid)
    if has_ds:
        wd = _uniform_convT(ks[6], in_ch, mid, 1)
        p["wd"] = _w_1x1_mat(wd).astype(jnp.bfloat16)
        p["gd"], p["bd"] = _bn_params(ks[7], mid)
    return p


def init_resnet_decoder(key, layers, image_channels):
    in_ch = 2048
    inter_list = [2048, 1024, 512, 256]
    keys = iter(jax.random.split(key, sum(layers) + 2))
    params = {"layers": []}
    for num_blocks, inter in zip(layers, inter_list):
        stride = 2
        blocks = []
        has_ds = (stride != 1) or (in_ch != inter // 4)
        blocks.append(init_block(next(keys), in_ch, inter, stride, has_ds))
        in_ch = inter // 4
        for _ in range(num_blocks - 1):
            blocks.append(init_block(next(keys), in_ch, inter, 1, False))
        params["layers"].append(blocks)
    w_final = _uniform_convT(next(keys), 64, image_channels, 2)
    params["conv1_w"] = _w_2x2_s2_mat(w_final).astype(jnp.bfloat16)
    params["bn1_g"], params["bn1_b"] = _bn_params(next(keys), image_channels)
    return params


# ---------------------------------------------------------------------------
# Forward pass (mirrors decoder_block.forward / ResNetDecoder.forward)
# ---------------------------------------------------------------------------
def decoder_block_forward(x, p):
    mid = p["g1"].shape[1]

    # conv1 (1x1) -> BN1 -> ReLU
    y = conv1x1(x, p["w1"])
    N, H, W_, _ = y.shape
    yf = y.reshape(-1, mid)
    m, v = batch_stats(yf)
    s, b = bn_scale_shift(m, v, p["g1"], p["b1"])
    y = bn_apply(yf, s, b, relu=True).reshape(N, H, W_, mid)

    # conv2 (3x3, stride 1 or 2) -> BN2 -> ReLU
    if p["stride"] == 2:
        y = conv3x3_stride2(y, p["w2"])
    else:
        y = conv3x3_stride1(y, p["w2"])
    N2, H2, W2, _ = y.shape
    yf = y.reshape(-1, mid)
    m, v = batch_stats(yf)
    s, b = bn_scale_shift(m, v, p["g2"], p["b2"])
    y = bn_apply(yf, s, b, relu=True).reshape(N2, H2, W2, mid)

    # conv3 (1x1); BN3 + (downsample BN) + residual add + ReLU fused below
    y = conv1x1(y, p["w3"])
    yf = y.reshape(-1, mid)
    m3, v3 = batch_stats(yf)
    s3, b3 = bn_scale_shift(m3, v3, p["g3"], p["b3"])

    if p["has_ds"]:
        ident = conv1x1_stride2_outpad1(x, p["wd"])
        idf = ident.reshape(-1, mid)
        md, vd = batch_stats(idf)
        sd, bd = bn_scale_shift(md, vd, p["gd"], p["bd"])
    else:
        idf = x.reshape(-1, mid)
        sd = jnp.ones((1, mid), jnp.float32)
        bd = jnp.zeros((1, mid), jnp.float32)

    out = dual_bn_add_relu(yf, s3, b3, idf, sd, bd)
    return out.reshape(N2, H2, W2, mid)


def resnet_decoder_forward(x_nchw, params):
    x = jnp.transpose(x_nchw, (0, 2, 3, 1)).astype(jnp.float32)   # NCHW -> NHWC
    for blocks in params["layers"]:
        for bp in blocks:
            x = decoder_block_forward(x, bp)
    # Final ConvTranspose2d(64, image_channels, k=2, s=2) -> BN -> ReLU.
    x = conv2x2_stride2(x, params["conv1_w"])
    N, H, W_, C = x.shape
    xf = x.reshape(-1, C)
    m, v = batch_stats(xf)
    s, b = bn_scale_shift(m, v, params["bn1_g"], params["bn1_b"])
    x = bn_apply(xf, s, b, relu=True).reshape(N, H, W_, C)
    return jnp.transpose(x, (0, 3, 1, 2))                          # NHWC -> NCHW


# ---------------------------------------------------------------------------
if __name__ == "__main__":
    key = jax.random.PRNGKey(0)
    pkey, xkey = jax.random.split(key)

    layers = [1, 1, 1, 1]          # ResNetDecoder(decoder_block, layers, image_channels)
    image_channels = 3
    params = init_resnet_decoder(pkey, layers, image_channels)

    # The module hard-codes in_channels=2048; use a small batch/spatial size.
    x = jax.random.normal(xkey, (2, 2048, 2, 2), jnp.float32)      # NCHW, like PyTorch

    y = resnet_decoder_forward(x, params)
    y = jax.block_until_ready(y)

    # 2x2 -> 4 -> 8 -> 16 -> 32 -> (final ConvTranspose2d k=2,s=2) -> 64
    assert y.shape == (2, image_channels, 64, 64), y.shape
    assert bool(jnp.all(jnp.isfinite(y)))
    print("KERNEL_OK")
</pallas_src>

<mosaic_0001>
module attributes {stable_mosaic.version = 11 : i64} {
  func.func @_matmul_acc_kernel(%arg0: i32, %arg1: i32, %arg2: memref<8x512xbf16, #tpu.memory_space<vmem>>, %arg3: memref<512x512xbf16, #tpu.memory_space<vmem>>, %arg4: memref<8x512xf32, #tpu.memory_space<vmem>>, %arg5: memref<8x512xf32, #tpu.memory_space<vmem>>) attributes {dimension_semantics = [#tpu.dimension_semantics<parallel>, #tpu.dimension_semantics<arbitrary>], iteration_bounds = array<i64: 1, 4>, scalar_prefetch = 0 : i64, scratch_operands = 1 : i64, tpu.core_type = #tpu.core_type<tc>, window_params = [{transform_indices = @transform_0, window_bounds = array<i64: 8, 512>}, {transform_indices = @transform_1, window_bounds = array<i64: 512, 512>}, {transform_indices = @transform_2, window_bounds = array<i64: 8, 512>}]} {
    %c0_i32 = arith.constant 0 : i32
    %0 = arith.cmpi eq, %arg1, %c0_i32 : i32
    %1 = arith.extui %0 : i1 to i32
    %c0_i32_0 = arith.constant 0 : i32
    %2 = arith.cmpi ne, %1, %c0_i32_0 : i32
    scf.if %2 {
      %cst_9 = arith.constant 0.000000e+00 : f32
      %12 = vector.broadcast %cst_9 : f32 to vector<8x512xf32>
      %c0_10 = arith.constant 0 : index
      %c0_11 = arith.constant 0 : index
      %13 = vector.load %arg5[%c0_10, %c0_11] : memref<8x512xf32, #tpu.memory_space<vmem>>, vector<8x512xf32>
      tpu.vector_store %arg5[%c0_10, %c0_11], %12 {strides = array<i32>} : memref<8x512xf32, #tpu.memory_space<vmem>>, vector<8x512xf32>,
    } else {
    }
    %c0 = arith.constant 0 : index
    %c0_1 = arith.constant 0 : index
    %3 = vector.load %arg5[%c0, %c0_1] : memref<8x512xf32, #tpu.memory_space<vmem>>, vector<8x512xf32>
    %c0_2 = arith.constant 0 : index
    %c0_3 = arith.constant 0 : index
    %4 = vector.load %arg2[%c0_2, %c0_3] : memref<8x512xbf16, #tpu.memory_space<vmem>>, vector<8x512xbf16>
    %c0_4 = arith.constant 0 : index
    %c0_5 = arith.constant 0 : index
    %5 = vector.load %arg3[%c0_4, %c0_5] : memref<512x512xbf16, #tpu.memory_space<vmem>>, vector<512x512xbf16>
    %cst = arith.constant dense<0.000000e+00> : vector<8x512xf32>
    %6 = tpu.matmul %4, %5, %cst {dimension_numbers = #tpu.dot_dimension_numbers<[1], [0], [0], [1], [0, 0, 1, 1], [], []>} : vector<8x512xbf16>, vector<512x512xbf16>, vector<8x512xf32> -> vector<8x512xf32>
    %7 = arith.addf %3, %6 : vector<8x512xf32>
    %c0_6 = arith.constant 0 : index
    %c0_7 = arith.constant 0 : index
    %8 = vector.load %arg5[%c0_6, %c0_7] : memref<8x512xf32, #tpu.memory_space<vmem>>, vector<8x512xf32>
    tpu.vector_store %arg5[%c0_6, %c0_7], %7 {strides = array<i32>} : memref<8x512xf32, #tpu.memory_space<vmem>>, vector<8x512xf32>,
    %c3_i32 = arith.constant 3 : i32
    %9 = arith.cmpi eq, %arg1, %c3_i32 : i32
    %10 = arith.extui %9 : i1 to i32
    %c0_i32_8 = arith.constant 0 : i32
    %11 = arith.cmpi ne, %10, %c0_i32_8 : i32
    scf.if %11 {
      %c0_9 = arith.constant 0 : index
      %c0_10 = arith.constant 0 : index
      %12 = vector.load %arg5[%c0_9, %c0_10] : memref<8x512xf32, #tpu.memory_space<vmem>>, vector<8x512xf32>
      %c0_11 = arith.constant 0 : index
      %c0_12 = arith.constant 0 : index
      %13 = vector.load %arg4[%c0_11, %c0_12] : memref<8x512xf32, #tpu.memory_space<vmem>>, vector<8x512xf32>
      tpu.vector_store %arg4[%c0_11, %c0_12], %12 {strides = array<i32>} : memref<8x512xf32, #tpu.memory_space<vmem>>, vector<8x512xf32>,
    } else {
    }
    return
  }
  func.func @transform_0(%arg0: i32, %arg1: i32) -> (i32, i32) {
    %c0_i32 = arith.constant 0 : i32
    return %arg0, %arg1 : i32, i32
  }
  func.func @transform_1(%arg0: i32, %arg1: i32) -> (i32, i32) {
    %c0_i32 = arith.constant 0 : i32
    %c0_i32_0 = arith.constant 0 : i32
    return %arg1, %c0_i32 : i32, i32
  }
  func.func @transform_2(%arg0: i32, %arg1: i32) -> (i32, i32) {
    %c0_i32 = arith.constant 0 : i32
    %c0_i32_0 = arith.constant 0 : i32
    return %arg0, %c0_i32 : i32, i32
  }
}

</mosaic_0001>

<llo_original>
// kernel: tpu_custom_call.1
$region0: #{tpu_custom_call.1}
  #allocation0 [shape = 'u32[]', space=smem, size = 0x4, offset = 0x4, fixed_abs, tag = 'smem constant byte address 0x4 - core index']
  #allocation1 [shape = 'u32[72,128]{1,0:T(1,128)}', space=vmem, size = 0x9000, scoped, tag = 'internal scratch']
  #allocation2 [shape = 'f32[8,512]{1,0:T(8,128)}', space=vmem, size = 0x4000, scoped, tag = 'scratch operand']
  %s0 = inlined_call_operand.hbm [shape: bf16[8,2048], index: 0, kind: input, shape index: {}]
  %s1 = inlined_call_operand.hbm [shape: bf16[2048,512], index: 1, kind: input, shape index: {}]
  %s2 = inlined_call_operand.hbm [shape: f32[8,512], index: 2, kind: output, shape index: {}]
  %s3 = sld [smem:[#allocation0]]
  $region57: #{tpu_custom_call.1} parent=0
    _
  %s5 = ssub.s32 1, %s3
  %s6 = scalar_select 0, %s5, %s3
  $region1: #{tpu_custom_call.1} parent=0
    #allocation3 [shape = 'u8[16384]{0}', space=vmem, size = 0x4000, scoped, tag = 'input window, operand 0']
    #allocation4 [shape = 's32[2]{0}', space=sflag, size = 0x8, scoped, tag = 'scoped memory for tpu_custom_call.1']
    #allocation5 [shape = 's32[2]{0}', space=sflag, size = 0x8, scoped, tag = 'scoped memory for tpu_custom_call.1']
    #allocation6 [shape = 'u8[1048576]{0}', space=vmem, size = 0x100000, scoped, tag = 'input window, operand 1']
    #allocation7 [shape = 's32[2]{0}', space=sflag, size = 0x8, scoped, tag = 'scoped memory for tpu_custom_call.1']
    #allocation8 [shape = 'u8[16384]{0}', space=vmem, size = 0x4000, scoped, tag = 'output window, operand 0, single buffered']
    %7 = vsyncpa [#allocation4], 0
    %s8 = scalar_lea.sflag [#allocation4], 1
    %9 = vsyncpa %s8, 0
    %10 = vsyncpa [#allocation7], 0
    %s11 = scalar_lea.sflag [#allocation7], 1
    %12 = vsyncpa %s11, 0
    %13 = vsyncpa [#allocation5], 0
    loop: start=0, step=1, limit=6
    $region2: #{tpu_custom_call.1} parent=1 // loop_pre_header
      _
    $region3: #{tpu_custom_call.1} parent=1 // loop_header
      %s15 = sphi 0, %s19
      %p16 = scmp.ge.s32.totalorder %s15, 6
      %s22 = sphi 0, %s34
      %s23 = sphi 0, %s30
      %s24 = sphi 0, %s22
      %s25 = sphi 0, %s23
      %s26 = sphi 0, %s24
      %s27 = sphi 0, %s25
      %s39 = sphi 0, %s41
      %s42 = sphi 0, %s39
      %s43 = sphi 0, %s42
      %s59 = sphi 0, %s43
      %s65 = sphi 0, %s67
      %s68 = sphi 0, %s65
      %s69 = sphi 0, %s68
      %s85 = sphi 0, %s69
      %s91 = sphi 0, %s93
      %s94 = sphi 0, %s91
      %s95 = sphi 0, %s94
      %s111 = sphi 0, %s95
    $region4: #{tpu_custom_call.1} parent=1 // loop_header_branch
      %18 = sbr.rel (%p16) target = $region8
    $region5: #{tpu_custom_call.1} parent=1 // loop_body
      %s20 = ssub.s32 %s15, 1
      %s21 = ssub.s32 %s15, 2
      %s28 = sadd.s32 1, %s23
      %p29 = scmp.ge.s32.totalorder %s28, 4
      %s30 = scalar_select %p29, 0, %s28
      %s31 = sadd.s32 1, %s22
      %s32 = scalar_select %p29, %s31, %s22
      %p33 = scmp.ge.s32.totalorder %s32, 1
      %s34 = scalar_select %p33, 0, %s32
      %s35 = ssub.s32 %s22, %s34
      %s36 = ssub.s32 %s23, %s30
      %s37 = sor.u32 %s35, %s36
      %p38 = scmp.eq.s32.totalorder %s37, 0
      %s40 = sadd.s32 %s39, 1
      %s41 = scalar_select %p38, %s39, %s40
      %p44 = pneg %p38
      %p45 = scmp.eq.s32.totalorder %s15, 3
      %p46 = por %p44, %p45
      %p47 = scmp.ne.s32.totalorder %s39, %s42
      %p48 = scmp.eq.s32.totalorder %s15, 0
      %p49 = por %p47, %p48
      %p50 = scmp.ne.s32.totalorder %s39, %s42
      %p51 = scmp.eq.s32.totalorder %s20, 3
      %p52 = por %p50, %p51
      %p53 = scmp.ne.s32.totalorder %s42, %s43
      %p54 = scmp.eq.s32.totalorder %s20, 0
      %p55 = por %p53, %p54
      %p56 = scmp.ne.s32.totalorder %s42, %s43
      %p57 = scmp.eq.s32.totalorder %s21, 3
      %p58 = por %p56, %p57
      %p60 = scmp.ne.s32.totalorder %s43, %s59
      %p61 = scmp.eq.s32.totalorder %s21, 0
      %p62 = por %p60, %p61
      %s63 = ssub.s32 %s23, %s30
      %p64 = scmp.eq.s32.totalorder %s63, 0
      %s66 = sadd.s32 %s65, 1
      %s67 = scalar_select %p64, %s65, %s66
      %p70 = pneg %p64
      %p71 = scmp.eq.s32.totalorder %s15, 3
      %p72 = por %p70, %p71
      %p73 = scmp.ne.s32.totalorder %s65, %s68
      %p74 = scmp.eq.s32.totalorder %s15, 0
      %p75 = por %p73, %p74
      %p76 = scmp.ne.s32.totalorder %s65, %s68
      %p77 = scmp.eq.s32.totalorder %s20, 3
      %p78 = por %p76, %p77
      %p79 = scmp.ne.s32.totalorder %s68, %s69
      %p80 = scmp.eq.s32.totalorder %s20, 0
      %p81 = por %p79, %p80
      %p82 = scmp.ne.s32.totalorder %s68, %s69
      %p83 = scmp.eq.s32.totalorder %s21, 3
      %p84 = por %p82, %p83
      %p86 = scmp.ne.s32.totalorder %s69, %s85
      %p87 = scmp.eq.s32.totalorder %s21, 0
      %p88 = por %p86, %p87
      %s89 = ssub.s32 %s22, %s34
      %p90 = scmp.eq.s32.totalorder %s89, 0
      %s92 = sadd.s32 %s91, 1
      %s93 = scalar_select %p90, %s91, %s92
      %p96 = pneg %p90
      %p97 = scmp.eq.s32.totalorder %s15, 3
      %p98 = por %p96, %p97
      %p99 = scmp.ne.s32.totalorder %s91, %s94
      %p100 = scmp.eq.s32.totalorder %s15, 0
      %p101 = por %p99, %p100
      %p102 = scmp.ne.s32.totalorder %s91, %s94
      %p103 = scmp.eq.s32.totalorder %s20, 3
      %p104 = por %p102, %p103
      %p105 = scmp.ne.s32.totalorder %s94, %s95
      %p106 = scmp.eq.s32.totalorder %s20, 0
      %p107 = por %p105, %p106
      %p108 = scmp.ne.s32.totalorder %s94, %s95
      %p109 = scmp.eq.s32.totalorder %s21, 3
      %p110 = por %p108, %p109
      %p112 = scmp.ne.s32.totalorder %s95, %s111
      %p113 = scmp.eq.s32.totalorder %s21, 0
      %p114 = por %p112, %p113
      %p115 = scmp.le.s32.totalorder 1, %s15
      %p116 = scmp.lt.s32.totalorder %s15, 5
      %p117 = pnand %p115, %p116
      %p118 = pneg %p117
      // Predicated region
      $region9: #{tpu_custom_call.1} parent=5 // pred_check
        _
      $region10: #{tpu_custom_call.1} parent=5 // pred_check_branch
        %120 = sbr.rel (%p117) target = $region12
      $region11: #{tpu_custom_call.1} parent=5 // pred_region
        %s121 = ssub.s32 %s15, 1
      $region12: #{tpu_custom_call.1} parent=5 // pred_fallthru
        _
      %p122 = scmp.lt.s32.totalorder %s15, 4
      // Predicated region
      $region13: #{tpu_custom_call.1} parent=5 // pred_check
        %p123 = pneg %p122
      $region14: #{tpu_custom_call.1} parent=5 // pred_check_branch
        %125 = sbr.rel (%p123) target = $region16
      $region15: #{tpu_custom_call.1} parent=5 // pred_region
        // Predicated region
        $region17: #{tpu_custom_call.1} parent=15 // pred_check
          %p126 = pneg %p49
        $region18: #{tpu_custom_call.1} parent=15 // pred_check_branch
          %128 = sbr.rel (%p126) target = $region20
        $region19: #{tpu_custom_call.1} parent=15 // pred_region
          %s129 = sand.u32 %s39, 1
          %s130 = scalar_lea.sflag [#allocation4], %s129
          %s131 = sand.u32 %s39, 1
          %s132 = smul.addr %s131, 16
          %s133 = scalar_lea.vmem [#allocation3], %s132
          %s134 = smul.u32 4, %s23
          %136 = vsyncadd %s130, 0
          %s137 = smul.addr %s22, 16
          %s138 = sadd.s32 %s134, %s137
          %s139 = smul.addr %s138, 4
          %s140 = scalar_lea.hbm %s0, %s139
          %s142 = sshll.u32 %s140, 4
          %s143 = int_to_ptr.hbm [resolvable:$true] %s142
          %s144 = sshll.u32 %s133, 4
          %s145 = int_to_ptr.vmem [resolvable:$true] %s144
          %147 = dma.hbm_to_vmem [thread:$0]  %s143, 256, %s145, %s130
        $region20: #{tpu_custom_call.1} parent=15 // pred_fallthru
          _
        // Predicated region
        $region21: #{tpu_custom_call.1} parent=15 // pred_check
          %p148 = pneg %p75
        $region22: #{tpu_custom_call.1} parent=15 // pred_check_branch
          %150 = sbr.rel (%p148) target = $region24
        $region23: #{tpu_custom_call.1} parent=15 // pred_region
          %s151 = sand.u32 %s65, 1
          %s152 = scalar_lea.sflag [#allocation7], %s151
          %s153 = sand.u32 %s65, 1
          %s154 = smul.addr %s153, 1024
          %s155 = scalar_lea.vmem [#allocation6], %s154
          %s156 = smul.u32 64, %s23
          %158 = vsyncadd %s152, 0
          %s159 = smul.addr %s156, 4
          %s160 = smul.addr %s159, 4
          %s161 = scalar_lea.hbm %s1, %s160
          %s162 = sshll.u32 %s161, 4
          %s163 = int_to_ptr.hbm [resolvable:$true] %s162
          %s164 = sshll.u32 %s155, 4
          %s165 = int_to_ptr.vmem [resolvable:$true] %s164
          %170 = dma.hbm_to_vmem [thread:$0]  %s163, 16384, %s165, %s152, 256, 256, 16
        $region24: #{tpu_custom_call.1} parent=15 // pred_fallthru
          _
      $region16: #{tpu_custom_call.1} parent=5 // pred_fallthru
        _
      %p171 = scmp.le.s32.totalorder 1, %s15
      %p172 = scmp.lt.s32.totalorder %s15, 5
      %p173 = pnand %p171, %p172
      %p174 = pneg %p173
      // Predicated region
      $region25: #{tpu_custom_call.1} parent=5 // pred_check
        _
      $region26: #{tpu_custom_call.1} parent=5 // pred_check_branch
        %176 = sbr.rel (%p173) target = $region28
      $region27: #{tpu_custom_call.1} parent=5 // pred_region
        %s177 = ssub.s32 %s15, 1
        %s178 = sand.u32 %s42, 1
        %s179 = scalar_lea.sflag [#allocation4], %s178
        %s180 = sand.u32 %s42, 1
        %s181 = smul.addr %s180, 16
        %s182 = scalar_lea.vmem [#allocation3], %s181
        // Predicated region
        $region29: #{tpu_custom_call.1} parent=27 // pred_check
          %p183 = pneg %p55
        $region30: #{tpu_custom_call.1} parent=27 // pred_check_branch
          %185 = sbr.rel (%p183) target = $region32
        $region31: #{tpu_custom_call.1} parent=27 // pred_region
          %187 = dma.done %s179, 256
        $region32: #{tpu_custom_call.1} parent=27 // pred_fallthru
          _
        %s188 = sand.u32 %s68, 1
        %s189 = scalar_lea.sflag [#allocation7], %s188
        %s190 = sand.u32 %s68, 1
        %s191 = smul.addr %s190, 1024
        %s192 = scalar_lea.vmem [#allocation6], %s191
        // Predicated region
        $region33: #{tpu_custom_call.1} parent=27 // pred_check
          %p193 = pneg %p81
        $region34: #{tpu_custom_call.1} parent=27 // pred_check_branch
          %195 = sbr.rel (%p193) target = $region36
        $region35: #{tpu_custom_call.1} parent=27 // pred_region
          %197 = dma.done %s189, 16384
        $region36: #{tpu_custom_call.1} parent=27 // pred_fallthru
          _
        %s198 = sand.u32 %s42, 1
        %s199 = scalar_lea.sflag [#allocation4], %s198
        %s200 = sand.u32 %s42, 1
        %s201 = smul.addr %s200, 16
        %s202 = scalar_lea.vmem [#allocation3], %s201
        %p203 = pneg %p55
        %p204 = pneg %p52
        %s205 = sand.u32 %s68, 1
        %s206 = scalar_lea.sflag [#allocation7], %s205
        %s207 = sand.u32 %s68, 1
        %s208 = smul.addr %s207, 1024
        %s209 = scalar_lea.vmem [#allocation6], %s208
        %p210 = pneg %p81
        %p211 = pneg %p78
        %p212 = pneg %p107
        %p213 = pneg %p104
        %s214 = smul.u32 4, %s25
        %s215 = smul.u32 64, %s25
        %p216 = scmp.eq.s32.totalorder %s25, 0
        // Predicated region
        $region37: #{tpu_custom_call.1} parent=27 // pred_check
          %p217 = pneg %p216
        $region38: #{tpu_custom_call.1} parent=27 // pred_check_branch
          %219 = sbr.rel (%p217) target = $region40
        $region39: #{tpu_custom_call.1} parent=27 // pred_region
          %220 = vst [vmem:[#allocation2] sm:$0xff] 0.0
          %221 = vst [vmem:[#allocation2 + $0x8] sm:$0xff] 0.0
          %222 = vst [vmem:[#allocation2 + $0x10] sm:$0xff] 0.0
          %223 = vst [vmem:[#allocation2 + $0x18] sm:$0xff] 0.0
        $region40: #{tpu_custom_call.1} parent=27 // pred_fallthru
          _
        %v224 = vld [vmem:[#allocation2] sm:$0xff]
        %v225 = vld [vmem:[#allocation2 + $0x8] sm:$0xff]
        %v226 = vld [vmem:[#allocation2 + $0x10] sm:$0xff]
        %v227 = vld [vmem:[#allocation2 + $0x18] sm:$0xff]
        %v228 = vld [vmem:[%s182] sm:$0xff]
        %v229 = vld [vmem:[%s182 + $0x8] sm:$0xff]
        %v230 = vld [vmem:[%s192] sm:$0xff]
        %v231 = vld [vmem:[%s192 + $0x8] sm:$0xff]
        %v232 = vld [vmem:[%s192 + $0x10] sm:$0xff]
        %v233 = vld [vmem:[%s192 + $0x18] sm:$0xff]
        %v234 = vld [vmem:[%s192 + $0x20] sm:$0xff]
        %v235 = vld [vmem:[%s192 + $0x28] sm:$0xff]
        %v236 = vld [vmem:[%s192 + $0x30] sm:$0xff]
        %v237 = vld [vmem:[%s192 + $0x38] sm:$0xff]
        %v238 = vld [vmem:[%s192 + $0x40] sm:$0xff]
        %v239 = vld [vmem:[%s192 + $0x48] sm:$0xff]
        %v240 = vld [vmem:[%s192 + $0x50] sm:$0xff]
        %v241 = vld [vmem:[%s192 + $0x58] sm:$0xff]
        %v242 = vld [vmem:[%s192 + $0x60] sm:$0xff]
        %v243 = vld [vmem:[%s192 + $0x68] sm:$0xff]
        %v244 = vld [vmem:[%s192 + $0x70] sm:$0xff]
        %v245 = vld [vmem:[%s192 + $0x78] sm:$0xff]
        %v246 = vld [vmem:[%s192 + $0x80] sm:$0xff]
        %v247 = vld [vmem:[%s192 + $0x88] sm:$0xff]
        %v248 = vld [vmem:[%s192 + $0x90] sm:$0xff]
        %v249 = vld [vmem:[%s192 + $0x98] sm:$0xff]
        %v250 = vld [vmem:[%s192 + $0xa0] sm:$0xff]
        %v251 = vld [vmem:[%s192 + $0xa8] sm:$0xff]
        %v252 = vld [vmem:[%s192 + $0xb0] sm:$0xff]
        %v253 = vld [vmem:[%s192 + $0xb8] sm:$0xff]
        %v254 = vld [vmem:[%s192 + $0xc0] sm:$0xff]
        %v255 = vld [vmem:[%s192 + $0xc8] sm:$0xff]
        %v256 = vld [vmem:[%s192 + $0xd0] sm:$0xff]
        %v257 = vld [vmem:[%s192 + $0xd8] sm:$0xff]
        %v258 = vld [vmem:[%s192 + $0xe0] sm:$0xff]
        %v259 = vld [vmem:[%s192 + $0xe8] sm:$0xff]
        %v260 = vld [vmem:[%s192 + $0xf0] sm:$0xff]
        %v261 = vld [vmem:[%s192 + $0xf8] sm:$0xff]
        %v262 = vld [vmem:[%s192 + $0x100] sm:$0xff]
        %v263 = vld [vmem:[%s192 + $0x108] sm:$0xff]
        %v264 = vld [vmem:[%s192 + $0x110] sm:$0xff]
        %v265 = vld [vmem:[%s192 + $0x118] sm:$0xff]
        %v266 = vld [vmem:[%s192 + $0x120] sm:$0xff]
        %v267 = vld [vmem:[%s192 + $0x128] sm:$0xff]
        %v268 = vld [vmem:[%s192 + $0x130] sm:$0xff]
        %v269 = vld [vmem:[%s192 + $0x138] sm:$0xff]
        %v270 = vld [vmem:[%s192 + $0x140] sm:$0xff]
        %v271 = vld [vmem:[%s192 + $0x148] sm:$0xff]
        %v272 = vld [vmem:[%s192 + $0x150] sm:$0xff]
        %v273 = vld [vmem:[%s192 + $0x158] sm:$0xff]
        %v274 = vld [vmem:[%s192 + $0x160] sm:$0xff]
        %v275 = vld [vmem:[%s192 + $0x168] sm:$0xff]
        %v276 = vld [vmem:[%s192 + $0x170] sm:$0xff]
        %v277 = vld [vmem:[%s192 + $0x178] sm:$0xff]
        %v278 = vld [vmem:[%s192 + $0x180] sm:$0xff]
        %v279 = vld [vmem:[%s192 + $0x188] sm:$0xff]
        %v280 = vld [vmem:[%s192 + $0x190] sm:$0xff]
        %v281 = vld [vmem:[%s192 + $0x198] sm:$0xff]
        %v282 = vld [vmem:[%s192 + $0x1a0] sm:$0xff]
        %v283 = vld [vmem:[%s192 + $0x1a8] sm:$0xff]
        %v284 = vld [vmem:[%s192 + $0x1b0] sm:$0xff]
        %v285 = vld [vmem:[%s192 + $0x1b8] sm:$0xff]
        %v286 = vld [vmem:[%s192 + $0x1c0] sm:$0xff]
        %v287 = vld [vmem:[%s192 + $0x1c8] sm:$0xff]
        %v288 = vld [vmem:[%s192 + $0x1d0] sm:$0xff]
        %v289 = vld [vmem:[%s192 + $0x1d8] sm:$0xff]
        %v290 = vld [vmem:[%s192 + $0x1e0] sm:$0xff]
        %v291 = vld [vmem:[%s192 + $0x1e8] sm:$0xff]
        %v292 = vld [vmem:[%s192 + $0x1f0] sm:$0xff]
        %v293 = vld [vmem:[%s192 + $0x1f8] sm:$0xff]
        %v294 = vld [vmem:[%s192 + $0x200] sm:$0xff]
        %v295 = vld [vmem:[%s192 + $0x208] sm:$0xff]
        %v296 = vld [vmem:[%s192 + $0x210] sm:$0xff]
        %v297 = vld [vmem:[%s192 + $0x218] sm:$0xff]
        %v298 = vld [vmem:[%s192 + $0x220] sm:$0xff]
        %v299 = vld [vmem:[%s192 + $0x228] sm:$0xff]
        %v300 = vld [vmem:[%s192 + $0x230] sm:$0xff]
        %v301 = vld [vmem:[%s192 + $0x238] sm:$0xff]
        %v302 = vld [vmem:[%s192 + $0x240] sm:$0xff]
        %v303 = vld [vmem:[%s192 + $0x248] sm:$0xff]
        %v304 = vld [vmem:[%s192 + $0x250] sm:$0xff]
        %v305 = vld [vmem:[%s192 + $0x258] sm:$0xff]
        %v306 = vld [vmem:[%s192 + $0x260] sm:$0xff]
        %v307 = vld [vmem:[%s192 + $0x268] sm:$0xff]
        %v308 = vld [vmem:[%s192 + $0x270] sm:$0xff]
        %v309 = vld [vmem:[%s192 + $0x278] sm:$0xff]
        %v310 = vld [vmem:[%s192 + $0x280] sm:$0xff]
        %v311 = vld [vmem:[%s192 + $0x288] sm:$0xff]
        %v312 = vld [vmem:[%s192 + $0x290] sm:$0xff]
        %v313 = vld [vmem:[%s192 + $0x298] sm:$0xff]
        %v314 = vld [vmem:[%s192 + $0x2a0] sm:$0xff]
        %v315 = vld [vmem:[%s192 + $0x2a8] sm:$0xff]
        %v316 = vld [vmem:[%s192 + $0x2b0] sm:$0xff]
        %v317 = vld [vmem:[%s192 + $0x2b8] sm:$0xff]
        %v318 = vld [vmem:[%s192 + $0x2c0] sm:$0xff]
        %v319 = vld [vmem:[%s192 + $0x2c8] sm:$0xff]
        %v320 = vld [vmem:[%s192 + $0x2d0] sm:$0xff]
        %v321 = vld [vmem:[%s192 + $0x2d8] sm:$0xff]
        %v322 = vld [vmem:[%s192 + $0x2e0] sm:$0xff]
        %v323 = vld [vmem:[%s192 + $0x2e8] sm:$0xff]
        %v324 = vld [vmem:[%s192 + $0x2f0] sm:$0xff]
        %v325 = vld [vmem:[%s192 + $0x2f8] sm:$0xff]
        %v326 = vld [vmem:[%s192 + $0x300] sm:$0xff]
        %v327 = vld [vmem:[%s192 + $0x308] sm:$0xff]
        %v328 = vld [vmem:[%s192 + $0x310] sm:$0xff]
        %v329 = vld [vmem:[%s192 + $0x318] sm:$0xff]
        %v330 = vld [vmem:[%s192 + $0x320] sm:$0xff]
        %v331 = vld [vmem:[%s192 + $0x328] sm:$0xff]
        %v332 = vld [vmem:[%s192 + $0x330] sm:$0xff]
        %v333 = vld [vmem:[%s192 + $0x338] sm:$0xff]
        %v334 = vld [vmem:[%s192 + $0x340] sm:$0xff]
        %v335 = vld [vmem:[%s192 + $0x348] sm:$0xff]
        %v336 = vld [vmem:[%s192 + $0x350] sm:$0xff]
        %v337 = vld [vmem:[%s192 + $0x358] sm:$0xff]
        %v338 = vld [vmem:[%s192 + $0x360] sm:$0xff]
        %v339 = vld [vmem:[%s192 + $0x368] sm:$0xff]
        %v340 = vld [vmem:[%s192 + $0x370] sm:$0xff]
        %v341 = vld [vmem:[%s192 + $0x378] sm:$0xff]
        %v342 = vld [vmem:[%s192 + $0x380] sm:$0xff]
        %v343 = vld [vmem:[%s192 + $0x388] sm:$0xff]
        %v344 = vld [vmem:[%s192 + $0x390] sm:$0xff]
        %v345 = vld [vmem:[%s192 + $0x398] sm:$0xff]
        %v346 = vld [vmem:[%s192 + $0x3a0] sm:$0xff]
        %v347 = vld [vmem:[%s192 + $0x3a8] sm:$0xff]
        %v348 = vld [vmem:[%s192 + $0x3b0] sm:$0xff]
        %v349 = vld [vmem:[%s192 + $0x3b8] sm:$0xff]
        %v350 = vld [vmem:[%s192 + $0x3c0] sm:$0xff]
        %v351 = vld [vmem:[%s192 + $0x3c8] sm:$0xff]
        %v352 = vld [vmem:[%s192 + $0x3d0] sm:$0xff]
        %v353 = vld [vmem:[%s192 + $0x3d8] sm:$0xff]
        %v354 = vld [vmem:[%s192 + $0x3e0] sm:$0xff]
        %v355 = vld [vmem:[%s192 + $0x3e8] sm:$0xff]
        %v356 = vld [vmem:[%s192 + $0x3f0] sm:$0xff]
        %v357 = vld [vmem:[%s192 + $0x3f8] sm:$0xff]
        %v360 = vunpack.c.l.b16 %v228
        %v361 = vunpack.c.h.b16 %v228
        %v362 = vunpack.c.l.b16 %v229
        %v363 = vunpack.c.h.b16 %v229
        %v364 = vpack.c.b16 %v360, %v360
        %v365 = vpack.c.b16 %v361, %v361
        %v366 = vpack.c.b16 %v362, %v362
        %v367 = vpack.c.b16 %v363, %v363
        %v500 = vunpack.c.l.b16 %v230
        %v501 = vunpack.c.h.b16 %v230
        %v502 = vunpack.c.l.b16 %v231
        %v503 = vunpack.c.h.b16 %v231
        %v504 = vunpack.c.l.b16 %v232
        %v505 = vunpack.c.h.b16 %v232
        %v506 = vunpack.c.l.b16 %v233
        %v507 = vunpack.c.h.b16 %v233
        %v508 = vunpack.c.l.b16 %v234
        %v509 = vunpack.c.h.b16 %v234
        %v510 = vunpack.c.l.b16 %v235
        %v511 = vunpack.c.h.b16 %v235
        %v512 = vunpack.c.l.b16 %v236
        %v513 = vunpack.c.h.b16 %v236
        %v514 = vunpack.c.l.b16 %v237
        %v515 = vunpack.c.h.b16 %v237
        %v516 = vunpack.c.l.b16 %v238
        %v517 = vunpack.c.h.b16 %v238
        %v518 = vunpack.c.l.b16 %v239
        %v519 = vunpack.c.h.b16 %v239
        %v520 = vunpack.c.l.b16 %v240
        %v521 = vunpack.c.h.b16 %v240
        %v522 = vunpack.c.l.b16 %v241
        %v523 = vunpack.c.h.b16 %v241
        %v524 = vunpack.c.l.b16 %v242
        %v525 = vunpack.c.h.b16 %v242
        %v526 = vunpack.c.l.b16 %v243
        %v527 = vunpack.c.h.b16 %v243
        %v528 = vunpack.c.l.b16 %v244
        %v529 = vunpack.c.h.b16 %v244
        %v530 = vunpack.c.l.b16 %v245
        %v531 = vunpack.c.h.b16 %v245
        %v532 = vunpack.c.l.b16 %v246
        %v533 = vunpack.c.h.b16 %v246
        %v534 = vunpack.c.l.b16 %v247
        %v535 = vunpack.c.h.b16 %v247
        %v536 = vunpack.c.l.b16 %v248
        %v537 = vunpack.c.h.b16 %v248
        %v538 = vunpack.c.l.b16 %v249
        %v539 = vunpack.c.h.b16 %v249
        %v540 = vunpack.c.l.b16 %v250
        %v541 = vunpack.c.h.b16 %v250
        %v542 = vunpack.c.l.b16 %v251
        %v543 = vunpack.c.h.b16 %v251
        %v544 = vunpack.c.l.b16 %v252
        %v545 = vunpack.c.h.b16 %v252
        %v546 = vunpack.c.l.b16 %v253
        %v547 = vunpack.c.h.b16 %v253
        %v548 = vunpack.c.l.b16 %v254
        %v549 = vunpack.c.h.b16 %v254
        %v550 = vunpack.c.l.b16 %v255
        %v551 = vunpack.c.h.b16 %v255
        %v552 = vunpack.c.l.b16 %v256
        %v553 = vunpack.c.h.b16 %v256
        %v554 = vunpack.c.l.b16 %v257
        %v555 = vunpack.c.h.b16 %v257
        %v556 = vunpack.c.l.b16 %v258
        %v557 = vunpack.c.h.b16 %v258
        %v558 = vunpack.c.l.b16 %v259
        %v559 = vunpack.c.h.b16 %v259
        %v560 = vunpack.c.l.b16 %v260
        %v561 = vunpack.c.h.b16 %v260
        %v562 = vunpack.c.l.b16 %v261
        %v563 = vunpack.c.h.b16 %v261
        %v564 = vunpack.c.l.b16 %v262
        %v565 = vunpack.c.h.b16 %v262
        %v566 = vunpack.c.l.b16 %v263
        %v567 = vunpack.c.h.b16 %v263
        %v568 = vunpack.c.l.b16 %v264
        %v569 = vunpack.c.h.b16 %v264
        %v570 = vunpack.c.l.b16 %v265
        %v571 = vunpack.c.h.b16 %v265
        %v572 = vunpack.c.l.b16 %v266
        %v573 = vunpack.c.h.b16 %v266
        %v574 = vunpack.c.l.b16 %v267
        %v575 = vunpack.c.h.b16 %v267
        %v576 = vunpack.c.l.b16 %v268
        %v577 = vunpack.c.h.b16 %v268
        %v578 = vunpack.c.l.b16 %v269
        %v579 = vunpack.c.h.b16 %v269
        %v580 = vunpack.c.l.b16 %v270
        %v581 = vunpack.c.h.b16 %v270
        %v582 = vunpack.c.l.b16 %v271
        %v583 = vunpack.c.h.b16 %v271
        %v584 = vunpack.c.l.b16 %v272
        %v585 = vunpack.c.h.b16 %v272
        %v586 = vunpack.c.l.b16 %v273
        %v587 = vunpack.c.h.b16 %v273
        %v588 = vunpack.c.l.b16 %v274
        %v589 = vunpack.c.h.b16 %v274
        %v590 = vunpack.c.l.b16 %v275
        %v591 = vunpack.c.h.b16 %v275
        %v592 = vunpack.c.l.b16 %v276
        %v593 = vunpack.c.h.b16 %v276
        %v594 = vunpack.c.l.b16 %v277
        %v595 = vunpack.c.h.b16 %v277
        %v596 = vunpack.c.l.b16 %v278
        %v597 = vunpack.c.h.b16 %v278
        %v598 = vunpack.c.l.b16 %v279
        %v599 = vunpack.c.h.b16 %v279
        %v600 = vunpack.c.l.b16 %v280
        %v601 = vunpack.c.h.b16 %v280
        %v602 = vunpack.c.l.b16 %v281
        %v603 = vunpack.c.h.b16 %v281
        %v604 = vunpack.c.l.b16 %v282
        %v605 = vunpack.c.h.b16 %v282
        %v606 = vunpack.c.l.b16 %v283
        %v607 = vunpack.c.h.b16 %v283
        %v608 = vunpack.c.l.b16 %v284
        %v609 = vunpack.c.h.b16 %v284
        %v610 = vunpack.c.l.b16 %v285
        %v611 = vunpack.c.h.b16 %v285
        %v612 = vunpack.c.l.b16 %v286
        %v613 = vunpack.c.h.b16 %v286
        %v614 = vunpack.c.l.b16 %v287
        %v615 = vunpack.c.h.b16 %v287
        %v616 = vunpack.c.l.b16 %v288
        %v617 = vunpack.c.h.b16 %v288
        %v618 = vunpack.c.l.b16 %v289
        %v619 = vunpack.c.h.b16 %v289
        %v620 = vunpack.c.l.b16 %v290
        %v621 = vunpack.c.h.b16 %v290
        %v622 = vunpack.c.l.b16 %v291
        %v623 = vunpack.c.h.b16 %v291
        %v624 = vunpack.c.l.b16 %v292
        %v625 = vunpack.c.h.b16 %v292
        %v626 = vunpack.c.l.b16 %v293
        %v627 = vunpack.c.h.b16 %v293
        %v628 = vunpack.c.l.b16 %v294
        %v629 = vunpack.c.h.b16 %v294
        %v630 = vunpack.c.l.b16 %v295
        %v631 = vunpack.c.h.b16 %v295
        %v632 = vunpack.c.l.b16 %v296
        %v633 = vunpack.c.h.b16 %v296
        %v634 = vunpack.c.l.b16 %v297
        %v635 = vunpack.c.h.b16 %v297
        %v636 = vunpack.c.l.b16 %v298
        %v637 = vunpack.c.h.b16 %v298
        %v638 = vunpack.c.l.b16 %v299
        %v639 = vunpack.c.h.b16 %v299
        %v640 = vunpack.c.l.b16 %v300
        %v641 = vunpack.c.h.b16 %v300
        %v642 = vunpack.c.l.b16 %v301
        %v643 = vunpack.c.h.b16 %v301
        %v644 = vunpack.c.l.b16 %v302
        %v645 = vunpack.c.h.b16 %v302
        %v646 = vunpack.c.l.b16 %v303
        %v647 = vunpack.c.h.b16 %v303
        %v648 = vunpack.c.l.b16 %v304
        %v649 = vunpack.c.h.b16 %v304
        %v650 = vunpack.c.l.b16 %v305
        %v651 = vunpack.c.h.b16 %v305
        %v652 = vunpack.c.l.b16 %v306
        %v653 = vunpack.c.h.b16 %v306
        %v654 = vunpack.c.l.b16 %v307
        %v655 = vunpack.c.h.b16 %v307
        %v656 = vunpack.c.l.b16 %v308
        %v657 = vunpack.c.h.b16 %v308
        %v658 = vunpack.c.l.b16 %v309
        %v659 = vunpack.c.h.b16 %v309
        %v660 = vunpack.c.l.b16 %v310
        %v661 = vunpack.c.h.b16 %v310
        %v662 = vunpack.c.l.b16 %v311
        %v663 = vunpack.c.h.b16 %v311
        %v664 = vunpack.c.l.b16 %v312
        %v665 = vunpack.c.h.b16 %v312
        %v666 = vunpack.c.l.b16 %v313
        %v667 = vunpack.c.h.b16 %v313
        %v668 = vunpack.c.l.b16 %v314
        %v669 = vunpack.c.h.b16 %v314
        %v670 = vunpack.c.l.b16 %v315
        %v671 = vunpack.c.h.b16 %v315
        %v672 = vunpack.c.l.b16 %v316
        %v673 = vunpack.c.h.b16 %v316
        %v674 = vunpack.c.l.b16 %v317
        %v675 = vunpack.c.h.b16 %v317
        %v676 = vunpack.c.l.b16 %v318
        %v677 = vunpack.c.h.b16 %v318
        %v678 = vunpack.c.l.b16 %v319
        %v679 = vunpack.c.h.b16 %v319
        %v680 = vunpack.c.l.b16 %v320
        %v681 = vunpack.c.h.b16 %v320
        %v682 = vunpack.c.l.b16 %v321
        %v683 = vunpack.c.h.b16 %v321
        %v684 = vunpack.c.l.b16 %v322
        %v685 = vunpack.c.h.b16 %v322
        %v686 = vunpack.c.l.b16 %v323
        %v687 = vunpack.c.h.b16 %v323
        %v688 = vunpack.c.l.b16 %v324
        %v689 = vunpack.c.h.b16 %v324
        %v690 = vunpack.c.l.b16 %v325
        %v691 = vunpack.c.h.b16 %v325
        %v692 = vunpack.c.l.b16 %v326
        %v693 = vunpack.c.h.b16 %v326
        %v694 = vunpack.c.l.b16 %v327
        %v695 = vunpack.c.h.b16 %v327
        %v696 = vunpack.c.l.b16 %v328
        %v697 = vunpack.c.h.b16 %v328
        %v698 = vunpack.c.l.b16 %v329
        %v699 = vunpack.c.h.b16 %v329
        %v700 = vunpack.c.l.b16 %v330
        %v701 = vunpack.c.h.b16 %v330
        %v702 = vunpack.c.l.b16 %v331
        %v703 = vunpack.c.h.b16 %v331
        %v704 = vunpack.c.l.b16 %v332
        %v705 = vunpack.c.h.b16 %v332
        %v706 = vunpack.c.l.b16 %v333
        %v707 = vunpack.c.h.b16 %v333
        %v708 = vunpack.c.l.b16 %v334
        %v709 = vunpack.c.h.b16 %v334
        %v710 = vunpack.c.l.b16 %v335
        %v711 = vunpack.c.h.b16 %v335
        %v712 = vunpack.c.l.b16 %v336
        %v713 = vunpack.c.h.b16 %v336
        %v714 = vunpack.c.l.b16 %v337
        %v715 = vunpack.c.h.b16 %v337
        %v716 = vunpack.c.l.b16 %v338
        %v717 = vunpack.c.h.b16 %v338
        %v718 = vunpack.c.l.b16 %v339
        %v719 = vunpack.c.h.b16 %v339
        %v720 = vunpack.c.l.b16 %v340
        %v721 = vunpack.c.h.b16 %v340
        %v722 = vunpack.c.l.b16 %v341
        %v723 = vunpack.c.h.b16 %v341
        %v724 = vunpack.c.l.b16 %v342
        %v725 = vunpack.c.h.b16 %v342
        %v726 = vunpack.c.l.b16 %v343
        %v727 = vunpack.c.h.b16 %v343
        %v728 = vunpack.c.l.b16 %v344
        %v729 = vunpack.c.h.b16 %v344
        %v730 = vunpack.c.l.b16 %v345
        %v731 = vunpack.c.h.b16 %v345
        %v732 = vunpack.c.l.b16 %v346
        %v733 = vunpack.c.h.b16 %v346
        %v734 = vunpack.c.l.b16 %v347
        %v735 = vunpack.c.h.b16 %v347
        %v736 = vunpack.c.l.b16 %v348
        %v737 = vunpack.c.h.b16 %v348
        %v738 = vunpack.c.l.b16 %v349
        %v739 = vunpack.c.h.b16 %v349
        %v740 = vunpack.c.l.b16 %v350
        %v741 = vunpack.c.h.b16 %v350
        %v742 = vunpack.c.l.b16 %v351
        %v743 = vunpack.c.h.b16 %v351
        %v744 = vunpack.c.l.b16 %v352
        %v745 = vunpack.c.h.b16 %v352
        %v746 = vunpack.c.l.b16 %v353
        %v747 = vunpack.c.h.b16 %v353
        %v748 = vunpack.c.l.b16 %v354
        %v749 = vunpack.c.h.b16 %v354
        %v750 = vunpack.c.l.b16 %v355
        %v751 = vunpack.c.h.b16 %v355
        %v752 = vunpack.c.l.b16 %v356
        %v753 = vunpack.c.h.b16 %v356
        %v754 = vunpack.c.l.b16 %v357
        %v755 = vunpack.c.h.b16 %v357
        %v756 = vpack.c.b16 %v504, %v500
        %v757 = vpack.c.b16 %v505, %v501
        %v758 = vpack.c.b16 %v506, %v502
        %v759 = vpack.c.b16 %v507, %v503
        %v760 = vpack.c.b16 %v512, %v508
        %v761 = vpack.c.b16 %v513, %v509
        %v762 = vpack.c.b16 %v514, %v510
        %v763 = vpack.c.b16 %v515, %v511
        %v764 = vpack.c.b16 %v520, %v516
        %v765 = vpack.c.b16 %v521, %v517
        %v766 = vpack.c.b16 %v522, %v518
        %v767 = vpack.c.b16 %v523, %v519
        %v768 = vpack.c.b16 %v528, %v524
        %v769 = vpack.c.b16 %v529, %v525
        %v770 = vpack.c.b16 %v530, %v526
        %v771 = vpack.c.b16 %v531, %v527
        %v772 = vpack.c.b16 %v536, %v532
        %v773 = vpack.c.b16 %v537, %v533
        %v774 = vpack.c.b16 %v538, %v534
        %v775 = vpack.c.b16 %v539, %v535
        %v776 = vpack.c.b16 %v544, %v540
        %v777 = vpack.c.b16 %v545, %v541
        %v778 = vpack.c.b16 %v546, %v542
        %v779 = vpack.c.b16 %v547, %v543
        %v780 = vpack.c.b16 %v552, %v548
        %v781 = vpack.c.b16 %v553, %v549
        %v782 = vpack.c.b16 %v554, %v550
        %v783 = vpack.c.b16 %v555, %v551
        %v784 = vpack.c.b16 %v560, %v556
        %v785 = vpack.c.b16 %v561, %v557
        %v786 = vpack.c.b16 %v562, %v558
        %v787 = vpack.c.b16 %v563, %v559
        %v788 = vpack.c.b16 %v568, %v564
        %v789 = vpack.c.b16 %v569, %v565
        %v790 = vpack.c.b16 %v570, %v566
        %v791 = vpack.c.b16 %v571, %v567
        %v792 = vpack.c.b16 %v576, %v572
        %v793 = vpack.c.b16 %v577, %v573
        %v794 = vpack.c.b16 %v578, %v574
        %v795 = vpack.c.b16 %v579, %v575
        %v796 = vpack.c.b16 %v584, %v580
        %v797 = vpack.c.b16 %v585, %v581
        %v798 = vpack.c.b16 %v586, %v582
        %v799 = vpack.c.b16 %v587, %v583
        %v800 = vpack.c.b16 %v592, %v588
        %v801 = vpack.c.b16 %v593, %v589
        %v802 = vpack.c.b16 %v594, %v590
        %v803 = vpack.c.b16 %v595, %v591
        %v804 = vpack.c.b16 %v600, %v596
        %v805 = vpack.c.b16 %v601, %v597
        %v806 = vpack.c.b16 %v602, %v598
        %v807 = vpack.c.b16 %v603, %v599
        %v808 = vpack.c.b16 %v608, %v604
        %v809 = vpack.c.b16 %v609, %v605
        %v810 = vpack.c.b16 %v610, %v606
        %v811 = vpack.c.b16 %v611, %v607
        %v812 = vpack.c.b16 %v616, %v612
        %v813 = vpack.c.b16 %v617, %v613
        %v814 = vpack.c.b16 %v618, %v614
        %v815 = vpack.c.b16 %v619, %v615
        %v816 = vpack.c.b16 %v624, %v620
        %v817 = vpack.c.b16 %v625, %v621
        %v818 = vpack.c.b16 %v626, %v622
        %v819 = vpack.c.b16 %v627, %v623
        %v820 = vpack.c.b16 %v632, %v628
        %v821 = vpack.c.b16 %v633, %v629
        %v822 = vpack.c.b16 %v634, %v630
        %v823 = vpack.c.b16 %v635, %v631
        %v824 = vpack.c.b16 %v640, %v636
        %v825 = vpack.c.b16 %v641, %v637
        %v826 = vpack.c.b16 %v642, %v638
        %v827 = vpack.c.b16 %v643, %v639
        %v828 = vpack.c.b16 %v648, %v644
        %v829 = vpack.c.b16 %v649, %v645
        %v830 = vpack.c.b16 %v650, %v646
        %v831 = vpack.c.b16 %v651, %v647
        %v832 = vpack.c.b16 %v656, %v652
        %v833 = vpack.c.b16 %v657, %v653
        %v834 = vpack.c.b16 %v658, %v654
        %v835 = vpack.c.b16 %v659, %v655
        %v836 = vpack.c.b16 %v664, %v660
        %v837 = vpack.c.b16 %v665, %v661
        %v838 = vpack.c.b16 %v666, %v662
        %v839 = vpack.c.b16 %v667, %v663
        %v840 = vpack.c.b16 %v672, %v668
        %v841 = vpack.c.b16 %v673, %v669
        %v842 = vpack.c.b16 %v674, %v670
        %v843 = vpack.c.b16 %v675, %v671
        %v844 = vpack.c.b16 %v680, %v676
        %v845 = vpack.c.b16 %v681, %v677
        %v846 = vpack.c.b16 %v682, %v678
        %v847 = vpack.c.b16 %v683, %v679
        %v848 = vpack.c.b16 %v688, %v684
        %v849 = vpack.c.b16 %v689, %v685
        %v850 = vpack.c.b16 %v690, %v686
        %v851 = vpack.c.b16 %v691, %v687
        %v852 = vpack.c.b16 %v696, %v692
        %v853 = vpack.c.b16 %v697, %v693
        %v854 = vpack.c.b16 %v698, %v694
        %v855 = vpack.c.b16 %v699, %v695
        %v856 = vpack.c.b16 %v704, %v700
        %v857 = vpack.c.b16 %v705, %v701
        %v858 = vpack.c.b16 %v706, %v702
        %v859 = vpack.c.b16 %v707, %v703
        %v860 = vpack.c.b16 %v712, %v708
        %v861 = vpack.c.b16 %v713, %v709
        %v862 = vpack.c.b16 %v714, %v710
        %v863 = vpack.c.b16 %v715, %v711
        %v864 = vpack.c.b16 %v720, %v716
        %v865 = vpack.c.b16 %v721, %v717
        %v866 = vpack.c.b16 %v722, %v718
        %v867 = vpack.c.b16 %v723, %v719
        %v868 = vpack.c.b16 %v728, %v724
        %v869 = vpack.c.b16 %v729, %v725
        %v870 = vpack.c.b16 %v730, %v726
        %v871 = vpack.c.b16 %v731, %v727
        %v872 = vpack.c.b16 %v736, %v732
        %v873 = vpack.c.b16 %v737, %v733
        %v874 = vpack.c.b16 %v738, %v734
        %v875 = vpack.c.b16 %v739, %v735
        %v876 = vpack.c.b16 %v744, %v740
        %v877 = vpack.c.b16 %v745, %v741
        %v878 = vpack.c.b16 %v746, %v742
        %v879 = vpack.c.b16 %v747, %v743
        %v880 = vpack.c.b16 %v752, %v748
        %v881 = vpack.c.b16 %v753, %v749
        %v882 = vpack.c.b16 %v754, %v750
        %v883 = vpack.c.b16 %v755, %v751
        %1012 = vmatpush.bf16.msra.mxu0 %v784
        %1013 = vmatpush.bf16.msra.mxu0 %v780
        %1014 = vmatpush.bf16.msra.mxu0 %v776
        %1015 = vmatpush.bf16.msra.mxu0 %v772
        %1016 = vmatpush.bf16.msra.mxu0 %v768
        %1017 = vmatpush.bf16.msra.mxu0 %v764
        %1018 = vmatpush.bf16.msra.mxu0 %v760
        %1019 = vmatpush.bf16.msra.mxu0 %v756
        %1020 = vmatmul.bf16.gmra.mxu0 %v364
        %v1021 = vpop.f32.mrf.mxu0
        %v1022 = vadd.f32 0.0, %v1021
        %v1023 = vpop.f32.mrf.mxu0
        %1024 = vdwg.mxu0
        %1025 = vmatpush.bf16.msra.mxu0 %v816
        %1026 = vmatpush.bf16.msra.mxu0 %v812
        %1027 = vmatpush.bf16.msra.mxu0 %v808
        %1028 = vmatpush.bf16.msra.mxu0 %v804
        %1029 = vmatpush.bf16.msra.mxu0 %v800
        %1030 = vmatpush.bf16.msra.mxu0 %v796
        %1031 = vmatpush.bf16.msra.mxu0 %v792
        %1032 = vmatpush.bf16.msra.mxu0 %v788
        %1033 = vmatmul.bf16.gmra.mxu0 %v365
        %v1034 = vpop.f32.mrf.mxu0
        %v1035 = vadd.f32 %v1022, %v1034
        %v1036 = vpop.f32.mrf.mxu0
        %1037 = vdwg.mxu0
        %1038 = vmatpush.bf16.msra.mxu0 %v848
        %1039 = vmatpush.bf16.msra.mxu0 %v844
        %1040 = vmatpush.bf16.msra.mxu0 %v840
        %1041 = vmatpush.bf16.msra.mxu0 %v836
        %1042 = vmatpush.bf16.msra.mxu0 %v832
        %1043 = vmatpush.bf16.msra.mxu0 %v828
        %1044 = vmatpush.bf16.msra.mxu0 %v824
        %1045 = vmatpush.bf16.msra.mxu0 %v820
        %1046 = vmatmul.bf16.gmra.mxu0 %v366
        %v1047 = vpop.f32.mrf.mxu0
        %v1048 = vadd.f32 %v1035, %v1047
        %v1049 = vpop.f32.mrf.mxu0
        %1050 = vdwg.mxu0
        %1051 = vmatpush.bf16.msra.mxu0 %v880
        %1052 = vmatpush.bf16.msra.mxu0 %v876
        %1053 = vmatpush.bf16.msra.mxu0 %v872
        %1054 = vmatpush.bf16.msra.mxu0 %v868
        %1055 = vmatpush.bf16.msra.mxu0 %v864
        %1056 = vmatpush.bf16.msra.mxu0 %v860
        %1057 = vmatpush.bf16.msra.mxu0 %v856
        %1058 = vmatpush.bf16.msra.mxu0 %v852
        %1059 = vmatmul.bf16.gmra.mxu0 %v367
        %v1060 = vpop.f32.mrf.mxu0
        %v1061 = vadd.f32 %v1048, %v1060
        %v1062 = vpop.f32.mrf.mxu0
        %1063 = vdwg.mxu0
        %1064 = vmatpush.bf16.msra.mxu0 %v785
        %1065 = vmatpush.bf16.msra.mxu0 %v781
        %1066 = vmatpush.bf16.msra.mxu0 %v777
        %1067 = vmatpush.bf16.msra.mxu0 %v773
        %1068 = vmatpush.bf16.msra.mxu0 %v769
        %1069 = vmatpush.bf16.msra.mxu0 %v765
        %1070 = vmatpush.bf16.msra.mxu0 %v761
        %1071 = vmatpush.bf16.msra.mxu0 %v757
        %1072 = vmatmul.bf16.gmra.mxu0 %v364
        %v1073 = vpop.f32.mrf.mxu0
        %v1074 = vadd.f32 0.0, %v1073
        %v1075 = vpop.f32.mrf.mxu0
        %1076 = vdwg.mxu0
        %1077 = vmatpush.bf16.msra.mxu0 %v817
        %1078 = vmatpush.bf16.msra.mxu0 %v813
        %1079 = vmatpush.bf16.msra.mxu0 %v809
        %1080 = vmatpush.bf16.msra.mxu0 %v805
        %1081 = vmatpush.bf16.msra.mxu0 %v801
        %1082 = vmatpush.bf16.msra.mxu0 %v797
        %1083 = vmatpush.bf16.msra.mxu0 %v793
        %1084 = vmatpush.bf16.msra.mxu0 %v789
        %1085 = vmatmul.bf16.gmra.mxu0 %v365
        %v1086 = vpop.f32.mrf.mxu0
        %v1087 = vadd.f32 %v1074, %v1086
        %v1088 = vpop.f32.mrf.mxu0
        %1089 = vdwg.mxu0
        %1090 = vmatpush.bf16.msra.mxu0 %v849
        %1091 = vmatpush.bf16.msra.mxu0 %v845
        %1092 = vmatpush.bf16.msra.mxu0 %v841
        %1093 = vmatpush.bf16.msra.mxu0 %v837
        %1094 = vmatpush.bf16.msra.mxu0 %v833
        %1095 = vmatpush.bf16.msra.mxu0 %v829
        %1096 = vmatpush.bf16.msra.mxu0 %v825
        %1097 = vmatpush.bf16.msra.mxu0 %v821
        %1098 = vmatmul.bf16.gmra.mxu0 %v366
        %v1099 = vpop.f32.mrf.mxu0
        %v1100 = vadd.f32 %v1087, %v1099
        %v1101 = vpop.f32.mrf.mxu0
        %1102 = vdwg.mxu0
        %1103 = vmatpush.bf16.msra.mxu0 %v881
        %1104 = vmatpush.bf16.msra.mxu0 %v877
        %1105 = vmatpush.bf16.msra.mxu0 %v873
        %1106 = vmatpush.bf16.msra.mxu0 %v869
        %1107 = vmatpush.bf16.msra.mxu0 %v865
        %1108 = vmatpush.bf16.msra.mxu0 %v861
        %1109 = vmatpush.bf16.msra.mxu0 %v857
        %1110 = vmatpush.bf16.msra.mxu0 %v853
        %1111 = vmatmul.bf16.gmra.mxu0 %v367
        %v1112 = vpop.f32.mrf.mxu0
        %v1113 = vadd.f32 %v1100, %v1112
        %v1114 = vpop.f32.mrf.mxu0
        %1115 = vdwg.mxu0
        %1116 = vmatpush.bf16.msra.mxu0 %v786
        %1117 = vmatpush.bf16.msra.mxu0 %v782
        %1118 = vmatpush.bf16.msra.mxu0 %v778
        %1119 = vmatpush.bf16.msra.mxu0 %v774
        %1120 = vmatpush.bf16.msra.mxu0 %v770
        %1121 = vmatpush.bf16.msra.mxu0 %v766
        %1122 = vmatpush.bf16.msra.mxu0 %v762
        %1123 = vmatpush.bf16.msra.mxu0 %v758
        %1124 = vmatmul.bf16.gmra.mxu0 %v364
        %v1125 = vpop.f32.mrf.mxu0
        %v1126 = vadd.f32 0.0, %v1125
        %v1127 = vpop.f32.mrf.mxu0
        %1128 = vdwg.mxu0
        %1129 = vmatpush.bf16.msra.mxu0 %v818
        %1130 = vmatpush.bf16.msra.mxu0 %v814
        %1131 = vmatpush.bf16.msra.mxu0 %v810
        %1132 = vmatpush.bf16.msra.mxu0 %v806
        %1133 = vmatpush.bf16.msra.mxu0 %v802
        %1134 = vmatpush.bf16.msra.mxu0 %v798
        %1135 = vmatpush.bf16.msra.mxu0 %v794
        %1136 = vmatpush.bf16.msra.mxu0 %v790
        %1137 = vmatmul.bf16.gmra.mxu0 %v365
        %v1138 = vpop.f32.mrf.mxu0
        %v1139 = vadd.f32 %v1126, %v1138
        %v1140 = vpop.f32.mrf.mxu0
        %1141 = vdwg.mxu0
        %1142 = vmatpush.bf16.msra.mxu0 %v850
        %1143 = vmatpush.bf16.msra.mxu0 %v846
        %1144 = vmatpush.bf16.msra.mxu0 %v842
        %1145 = vmatpush.bf16.msra.mxu0 %v838
        %1146 = vmatpush.bf16.msra.mxu0 %v834
        %1147 = vmatpush.bf16.msra.mxu0 %v830
        %1148 = vmatpush.bf16.msra.mxu0 %v826
        %1149 = vmatpush.bf16.msra.mxu0 %v822
        %1150 = vmatmul.bf16.gmra.mxu0 %v366
        %v1151 = vpop.f32.mrf.mxu0
        %v1152 = vadd.f32 %v1139, %v1151
        %v1153 = vpop.f32.mrf.mxu0
        %1154 = vdwg.mxu0
        %1155 = vmatpush.bf16.msra.mxu0 %v882
        %1156 = vmatpush.bf16.msra.mxu0 %v878
        %1157 = vmatpush.bf16.msra.mxu0 %v874
        %1158 = vmatpush.bf16.msra.mxu0 %v870
        %1159 = vmatpush.bf16.msra.mxu0 %v866
        %1160 = vmatpush.bf16.msra.mxu0 %v862
        %1161 = vmatpush.bf16.msra.mxu0 %v858
        %1162 = vmatpush.bf16.msra.mxu0 %v854
        %1163 = vmatmul.bf16.gmra.mxu0 %v367
        %v1164 = vpop.f32.mrf.mxu0
        %v1165 = vadd.f32 %v1152, %v1164
        %v1166 = vpop.f32.mrf.mxu0
        %1167 = vdwg.mxu0
        %1168 = vmatpush.bf16.msra.mxu0 %v787
        %1169 = vmatpush.bf16.msra.mxu0 %v783
        %1170 = vmatpush.bf16.msra.mxu0 %v779
        %1171 = vmatpush.bf16.msra.mxu0 %v775
        %1172 = vmatpush.bf16.msra.mxu0 %v771
        %1173 = vmatpush.bf16.msra.mxu0 %v767
        %1174 = vmatpush.bf16.msra.mxu0 %v763
        %1175 = vmatpush.bf16.msra.mxu0 %v759
        %1176 = vmatmul.bf16.gmra.mxu0 %v364
        %v1177 = vpop.f32.mrf.mxu0
        %v1178 = vadd.f32 0.0, %v1177
        %v1179 = vpop.f32.mrf.mxu0
        %1180 = vdwg.mxu0
        %1181 = vmatpush.bf16.msra.mxu0 %v819
        %1182 = vmatpush.bf16.msra.mxu0 %v815
        %1183 = vmatpush.bf16.msra.mxu0 %v811
        %1184 = vmatpush.bf16.msra.mxu0 %v807
        %1185 = vmatpush.bf16.msra.mxu0 %v803
        %1186 = vmatpush.bf16.msra.mxu0 %v799
        %1187 = vmatpush.bf16.msra.mxu0 %v795
        %1188 = vmatpush.bf16.msra.mxu0 %v791
        %1189 = vmatmul.bf16.gmra.mxu0 %v365
        %v1190 = vpop.f32.mrf.mxu0
        %v1191 = vadd.f32 %v1178, %v1190
        %v1192 = vpop.f32.mrf.mxu0
        %1193 = vdwg.mxu0
        %1194 = vmatpush.bf16.msra.mxu0 %v851
        %1195 = vmatpush.bf16.msra.mxu0 %v847
        %1196 = vmatpush.bf16.msra.mxu0 %v843
        %1197 = vmatpush.bf16.msra.mxu0 %v839
        %1198 = vmatpush.bf16.msra.mxu0 %v835
        %1199 = vmatpush.bf16.msra.mxu0 %v831
        %1200 = vmatpush.bf16.msra.mxu0 %v827
        %1201 = vmatpush.bf16.msra.mxu0 %v823
        %1202 = vmatmul.bf16.gmra.mxu0 %v366
        %v1203 = vpop.f32.mrf.mxu0
        %v1204 = vadd.f32 %v1191, %v1203
        %v1205 = vpop.f32.mrf.mxu0
        %1206 = vdwg.mxu0
        %1207 = vmatpush.bf16.msra.mxu0 %v883
        %1208 = vmatpush.bf16.msra.mxu0 %v879
        %1209 = vmatpush.bf16.msra.mxu0 %v875
        %1210 = vmatpush.bf16.msra.mxu0 %v871
        %1211 = vmatpush.bf16.msra.mxu0 %v867
        %1212 = vmatpush.bf16.msra.mxu0 %v863
        %1213 = vmatpush.bf16.msra.mxu0 %v859
        %1214 = vmatpush.bf16.msra.mxu0 %v855
        %1215 = vmatmul.bf16.gmra.mxu0 %v367
        %v1216 = vpop.f32.mrf.mxu0
        %v1217 = vadd.f32 %v1204, %v1216
        %v1218 = vpop.f32.mrf.mxu0
        %1219 = vdwg.mxu0
        %v1220 = vadd.f32 %v224, %v1061
        %v1221 = vadd.f32 %v225, %v1113
        %v1222 = vadd.f32 %v226, %v1165
        %v1223 = vadd.f32 %v227, %v1217
        %1224 = vst [vmem:[#allocation2] sm:$0xff] %v1220
        %1225 = vst [vmem:[#allocation2 + $0x8] sm:$0xff] %v1221
        %1226 = vst [vmem:[#allocation2 + $0x10] sm:$0xff] %v1222
        %1227 = vst [vmem:[#allocation2 + $0x18] sm:$0xff] %v1223
        %p1228 = scmp.eq.s32.totalorder %s25, 3
        // Predicated region
        $region41: #{tpu_custom_call.1} parent=27 // pred_check
          %p1229 = pneg %p1228
        $region42: #{tpu_custom_call.1} parent=27 // pred_check_branch
          %1231 = sbr.rel (%p1229) target = $region44
        $region43: #{tpu_custom_call.1} parent=27 // pred_region
          %v1232 = vld [vmem:[#allocation2] sm:$0xff]
          %v1233 = vld [vmem:[#allocation2 + $0x8] sm:$0xff]
          %v1234 = vld [vmem:[#allocation2 + $0x10] sm:$0xff]
          %v1235 = vld [vmem:[#allocation2 + $0x18] sm:$0xff]
          %1236 = vst [vmem:[#allocation8] sm:$0xff] %v1232
          %1237 = vst [vmem:[#allocation8 + $0x8] sm:$0xff] %v1233
          %1238 = vst [vmem:[#allocation8 + $0x10] sm:$0xff] %v1234
          %1239 = vst [vmem:[#allocation8 + $0x18] sm:$0xff] %v1235
        $region44: #{tpu_custom_call.1} parent=27 // pred_fallthru
          _
        // Predicated region
        $region45: #{tpu_custom_call.1} parent=27 // pred_check
          %p1240 = pneg %p104
        $region46: #{tpu_custom_call.1} parent=27 // pred_check_branch
          %1242 = sbr.rel (%p1240) target = $region48
        $region47: #{tpu_custom_call.1} parent=27 // pred_region
          %1244 = vsyncadd [#allocation5], 0
          %s1245 = smul.addr %s24, 4
          %s1246 = smul.addr %s1245, 8
          %s1247 = scalar_lea.hbm %s2, %s1246
          %s1249 = sshll.u32 [#allocation8], 4
          %s1250 = int_to_ptr.vmem [resolvable:$true] %s1249
          %s1251 = sshll.u32 %s1247, 4
          %s1252 = int_to_ptr.hbm [resolvable:$true] %s1251
          %1254 = dma.vmem_to_hbm [thread:$0]  %s1250, 512, %s1252, [#allocation5]
        $region48: #{tpu_custom_call.1} parent=27 // pred_fallthru
          _
        // Predicated region
        $region49: #{tpu_custom_call.1} parent=27 // pred_check
          %p1255 = pneg %p104
        $region50: #{tpu_custom_call.1} parent=27 // pred_check_branch
          %1257 = sbr.rel (%p1255) target = $region52
        $region51: #{tpu_custom_call.1} parent=27 // pred_region
          %1259 = dma.done [#allocation5], 512
        $region52: #{tpu_custom_call.1} parent=27 // pred_fallthru
          _
      $region28: #{tpu_custom_call.1} parent=5 // pred_fallthru
        _
      %p1260 = scmp.le.s32.totalorder 2, %s15
      // Predicated region
      $region53: #{tpu_custom_call.1} parent=5 // pred_check
        %p1261 = pneg %p1260
      $region54: #{tpu_custom_call.1} parent=5 // pred_check_branch
        %1263 = sbr.rel (%p1261) target = $region56
      $region55: #{tpu_custom_call.1} parent=5 // pred_region
        %s1264 = ssub.s32 %s15, 2
      $region56: #{tpu_custom_call.1} parent=5 // pred_fallthru
        _
    $region6: #{tpu_custom_call.1} parent=1 // loop_footer
      %s19 = sadd.s32 1, %s15
    $region7: #{tpu_custom_call.1} parent=1 // loop_footer_branch
      %14 = sbr.rel target = $region3
    $region8: #{tpu_custom_call.1} parent=1 // loop_exit
      _
    %1265 = vsyncpa [#allocation4], 1
    %s1266 = scalar_lea.sflag [#allocation4], 1
    %1267 = vsyncpa %s1266, 1
    %1268 = vsyncpa [#allocation7], 1
    %s1269 = scalar_lea.sflag [#allocation7], 1
    %1270 = vsyncpa %s1269, 1
    %1271 = vsyncpa [#allocation5], 1
    %s1272 = scalar_lea.sflag [#allocation5], 1
    %1273 = vsyncpa %s1272, 1

</llo_original>
